<compile_context>
chip_gen: v7x
topology: tpu7x:2x2x1
jax: 0.10.0
libtpu: 0.0.40
codegen_flags: <defaults>
</compile_context>

<pallas_src>
import functools

import jax
import jax.numpy as jnp
from jax import lax
from jax.experimental import pallas as pl
from jax.experimental.pallas import tpu as pltpu


def up_conv_kernel(xm_ref, xh_ref, w_ref, scale_ref, shift_ref, o_ref,
                   *, cin, cout, w_sp, th):
    """One (batch n, row-tile t) grid step of the upsample-folded conv.

    xm_ref:    (1, Cin, tH*W)     bf16  tile rows, spatial flattened on lanes
    xh_ref:    (1, 1, Cin, 2*W)   bf16  halo: row above + row below the tile
    w_ref:     (4*Cout, 9*Cin)    bf16  subpixel-folded conv weights,
                                        rows=(a,b,o), cols=(ty,tx,ci)
    scale_ref: (4*Cout, 1)        f32   BN scale  gamma/sqrt(var+eps)
    shift_ref: (4*Cout, 1)        f32   folded conv-bias + BN shift
    o_ref:     (1, 4*Cout, tH*W)  bf16  phase-packed output tile (lane-dense)
    """
    m = th * w_sp

    xm = xm_ref[0]                       # (Cin, tH*W)
    xh = xh_ref[0, 0]                    # (Cin, 2*W)
    z1 = jnp.zeros((cin, 1), xm.dtype)
    # Flattened window of padded rows [t*tH, t*tH + tH + 2), plus one zero lane
    # on each side so every tap below is a static, in-bounds lane slice.
    xw = jnp.concatenate(
        [z1, xh[:, :w_sp], xm, xh[:, w_sp:], z1], axis=-1)  # (Cin, (tH+2)*W + 2)

    # Column-boundary masks (the conv's zero padding in the W direction).
    col = lax.broadcasted_iota(jnp.int32, (1, m), 1) % w_sp
    mask_l = col > 0               # tap column j-1 invalid at j == 0
    mask_r = col < (w_sp - 1)      # tap column j+1 invalid at j == W-1

    # Tap (ty, tx) of output pixel m = i*W + j reads window lane
    # m + ty*W + (tx-1) + 1 : a static lane shift, K stays on sublanes.
    slabs = []
    for ty in range(3):
        base = ty * w_sp + 1
        s_m1 = xw[:, base - 1:base - 1 + m]
        s_0 = xw[:, base:base + m]
        s_p1 = xw[:, base + 1:base + 1 + m]
        slabs.append(jnp.where(mask_l, s_m1, jnp.zeros_like(s_m1)))
        slabs.append(s_0)
        slabs.append(jnp.where(mask_r, s_p1, jnp.zeros_like(s_p1)))

    wmat = w_ref[...]                                       # (4*Cout, 9*Cin) bf16
    if 9 * cin <= 256:
        # Small K: one MXU matmul with a K-major RHS (K on sublanes,
        # spatial tile on lanes) -> no implicit RHS transpose.
        patches = jnp.concatenate(slabs, axis=0)            # (9*Cin, tH*W)
        acc = jnp.dot(wmat, patches,
                      preferred_element_type=jnp.float32)   # (4*Cout, tH*W) f32
    else:
        # Large Cin: per-tap K is already MXU-efficient -> skip the concat and
        # accumulate 9 dots instead.
        acc = jnp.zeros((4 * cout, m), jnp.float32)
        for k, slab in enumerate(slabs):
            acc += jnp.dot(wmat[:, k * cin:(k + 1) * cin], slab,
                           preferred_element_type=jnp.float32)

    # f32 epilogue: BN scale (kept out of the bf16 weights), folded bias/BN
    # shift, ReLU; bf16 lane-dense store (tH*W lanes, multiple of 128/256).
    y = jnp.maximum(acc * scale_ref[...] + shift_ref[...], 0.0)
    o_ref[0] = y.astype(o_ref.dtype)


def _pick_row_tile(H, W, Cin, Cout, budget_bytes):
    """Largest row tile tH (divisor of H) whose lane extent tH*W is a multiple
    of 256 (then 128) and whose estimated VMEM footprint fits the budget."""
    def est_bytes(th):
        m = th * W
        return (2 * Cin * m * 2              # main input, double-buffered, bf16
                + 2 * Cin * 2 * W * 2        # halo input, double-buffered
                + 2 * 4 * Cout * m * 2       # output, double-buffered, bf16
                + 9 * Cin * m * 2            # im2col patches (bf16)
                + Cin * (m + 2 * W + 2) * 2  # window
                + 4 * Cout * m * 4           # f32 accumulator
                + 2 * (4 * Cout * 9 * Cin * 2 + 2 * 4 * Cout * 4))  # params

    divisors = [d for d in range(H, 0, -1) if H % d == 0]
    for lane_mult in (256, 128):
        for d in divisors:
            if (d * W) % lane_mult == 0 and est_bytes(d) <= budget_bytes:
                return d
    # Tiny / awkward shapes: collapse the row grid (full-height tile).
    # TODO(synk): add W-tiling for shapes where no 128-lane row tile fits VMEM.
    return H


def up_conv_forward(x_nchw, w, b, gamma, beta, running_mean, running_var, eps=1e-5):
    """Forward pass of up_conv.  x_nchw: (N, Cin, H, W) -> (N, Cout, 2H, 2W)."""
    N, Cin, H, W = x_nchw.shape
    Cout = w.shape[0]

    # ---- generation-aware VMEM budget / tile choice ----
    try:
        vmem_cap = int(pltpu.get_tpu_info().vmem_capacity_bytes)
    except Exception:                       # conservative fallback
        vmem_cap = 64 * 1024 * 1024
    vmem_limit = min(vmem_cap * 3 // 4, 100 * 1024 * 1024)  # ~96MiB v5e/v6e, ~48MiB v7x
    tH = _pick_row_tile(H, W, Cin, Cout, vmem_limit // 2)
    T = H // tH
    M = tH * W

    # ---- layout plumbing on the SMALL original-resolution input (bf16) ----
    xb = x_nchw.astype(jnp.bfloat16)                        # (N, Cin, H, W)
    x_main = xb.reshape(N, Cin, H * W)                      # spatial on lanes
    xpr = jnp.pad(xb, ((0, 0), (0, 0), (1, 1), (0, 0)))     # row halo only
    halo_top = xpr[:, :, 0:H:tH, :]                         # row above each tile
    halo_bot = xpr[:, :, tH + 1:H + 2:tH, :]                # row below each tile
    x_halo = jnp.stack([halo_top, halo_bot], axis=3)        # (N, Cin, T, 2, W)
    x_halo = x_halo.reshape(N, Cin, T, 2 * W).transpose(0, 2, 1, 3)  # (N, T, Cin, 2W)

    # ---- parameter folding ----
    # BN (running stats) + conv bias.  Scale stays f32 (epilogue multiply).
    scale = gamma.astype(jnp.float32) * lax.rsqrt(running_var.astype(jnp.float32) + eps)
    shift = ((b.astype(jnp.float32) - running_mean.astype(jnp.float32)) * scale
             + beta.astype(jnp.float32))

    # Subpixel fold of the nearest-2x upsample: each output phase (a,b) is an
    # effective conv over the ORIGINAL resolution.
    sel = jnp.array([[[1, 0, 0], [0, 1, 1], [0, 0, 0]],
                     [[0, 0, 0], [1, 1, 0], [0, 0, 1]]], jnp.float32)
    weff = jnp.einsum("ayk,bxl,oikl->aboyxi", sel, sel, w.astype(jnp.float32))
    w_folded = weff.reshape(4 * Cout, 9 * Cin).astype(jnp.bfloat16)  # rows=(a,b,o)
    scale4 = jnp.tile(scale, 4).reshape(4 * Cout, 1)
    shift4 = jnp.tile(shift, 4).reshape(4 * Cout, 1)

    kernel = functools.partial(up_conv_kernel, cin=Cin, cout=Cout, w_sp=W, th=tH)

    # ---- hot path: Pallas kernel (upsample-folded conv + BN + ReLU) ----
    out_flat = pl.pallas_call(
        kernel,
        out_shape=jax.ShapeDtypeStruct((N, 4 * Cout, H * W), jnp.bfloat16),
        grid_spec=pltpu.PrefetchScalarGridSpec(
            num_scalar_prefetch=0,
            grid=(N, T),
            in_specs=[
                pl.BlockSpec((1, Cin, M), lambda n, t: (n, 0, t)),
                pl.BlockSpec((1, 1, Cin, 2 * W), lambda n, t: (n, t, 0, 0)),
                pl.BlockSpec((4 * Cout, 9 * Cin), lambda n, t: (0, 0)),
                pl.BlockSpec((4 * Cout, 1), lambda n, t: (0, 0)),
                pl.BlockSpec((4 * Cout, 1), lambda n, t: (0, 0)),
            ],
            out_specs=pl.BlockSpec((1, 4 * Cout, M), lambda n, t: (n, 0, t)),
        ),
        compiler_params=pltpu.CompilerParams(
            dimension_semantics=("parallel", "parallel"),
            vmem_limit_bytes=vmem_limit,
        ),
    )(x_main, x_halo, w_folded, scale4, shift4)

    # Phase de-interleave (single fused XLA transpose over bf16 data):
    # out_flat[n, (a*2+b)*Cout+o, i*W+j] = Y[n, o, 2i+a, 2j+b].
    o = out_flat.reshape(N, 2, 2, Cout, H, W)               # (n, a, b, o, i, j)
    o = jnp.transpose(o, (0, 3, 4, 1, 5, 2))                # (n, o, i, a, j, b)
    return o.reshape(N, Cout, 2 * H, 2 * W).astype(jnp.float32)


def _reference(x_nchw, w, b, gamma, beta, running_mean, running_var, eps=1e-5):
    """Pure-JAX f32 reference (for correctness check)."""
    x = jnp.repeat(jnp.repeat(x_nchw, 2, axis=2), 2, axis=3)
    y = jax.lax.conv_general_dilated(
        x.astype(jnp.float32), w.astype(jnp.float32),
        window_strides=(1, 1), padding=((1, 1), (1, 1)),
        dimension_numbers=("NCHW", "OIHW", "NCHW"))
    y = y + b[None, :, None, None]
    inv_std = 1.0 / jnp.sqrt(running_var + eps)
    y = (y - running_mean[None, :, None, None]) * (gamma * inv_std)[None, :, None, None] \
        + beta[None, :, None, None]
    return jnp.maximum(y, 0.0)


if __name__ == "__main__":
    # small shapes consistent with the module: batch=2, ch_in=4, ch_out=8, spatial=16
    N, CH_IN, CH_OUT, H, W = 2, 4, 8, 16, 16

    key = jax.random.PRNGKey(0)
    k_x, k_w, k_b, k_g, k_be = jax.random.split(key, 5)

    x = jax.random.normal(k_x, (N, CH_IN, H, W), dtype=jnp.float32)

    # deterministic parameter init (PyTorch-like uniform bounds)
    fan_in = CH_IN * 3 * 3
    bound = 1.0 / (fan_in ** 0.5)
    w = jax.random.uniform(k_w, (CH_OUT, CH_IN, 3, 3), minval=-bound, maxval=bound,
                           dtype=jnp.float32)
    b = jax.random.uniform(k_b, (CH_OUT,), minval=-bound, maxval=bound, dtype=jnp.float32)
    gamma = 1.0 + 0.1 * jax.random.normal(k_g, (CH_OUT,), dtype=jnp.float32)
    beta = 0.1 * jax.random.normal(k_be, (CH_OUT,), dtype=jnp.float32)
    running_mean = jnp.zeros((CH_OUT,), jnp.float32)
    running_var = jnp.ones((CH_OUT,), jnp.float32)

    fwd = jax.jit(up_conv_forward)
    out = fwd(x, w, b, gamma, beta, running_mean, running_var)
    out = jax.block_until_ready(out)

    ref = _reference(x, w, b, gamma, beta, running_mean, running_var)
    assert out.shape == (N, CH_OUT, 2 * H, 2 * W), out.shape
    # bf16 matmul operands + bf16 kernel store (f32 accumulation) -> bf16-level tolerance.
    assert jnp.allclose(out, ref, atol=5e-2, rtol=5e-2), float(jnp.max(jnp.abs(out - ref)))

    print("KERNEL_OK")
</pallas_src>

<mosaic_0001>
module attributes {stable_mosaic.version = 11 : i64} {
  func.func @up_conv_kernel(%arg0: i32, %arg1: i32, %arg2: memref<1x4x256xbf16, #tpu.memory_space<vmem>>, %arg3: memref<1x1x4x32xbf16, #tpu.memory_space<vmem>>, %arg4: memref<32x36xbf16, #tpu.memory_space<vmem>>, %arg5: memref<32x1xf32, #tpu.memory_space<vmem>>, %arg6: memref<32x1xf32, #tpu.memory_space<vmem>>, %arg7: memref<1x32x256xbf16, #tpu.memory_space<vmem>>) attributes {dimension_semantics = [#tpu.dimension_semantics<parallel>, #tpu.dimension_semantics<parallel>], iteration_bounds = array<i64: 2, 1>, scalar_prefetch = 0 : i64, scratch_operands = 0 : i64, tpu.core_type = #tpu.core_type<tc>, window_params = [{transform_indices = @transform_0, window_bounds = array<i64: 1, 4, 256>}, {transform_indices = @transform_1, window_bounds = array<i64: 1, 1, 4, 32>}, {pipeline_mode = #tpu.pipeline_mode<synchronous>, transform_indices = @transform_2, window_bounds = array<i64: 32, 36>}, {pipeline_mode = #tpu.pipeline_mode<synchronous>, transform_indices = @transform_3, window_bounds = array<i64: 32, 1>}, {pipeline_mode = #tpu.pipeline_mode<synchronous>, transform_indices = @transform_4, window_bounds = array<i64: 32, 1>}, {transform_indices = @transform_5, window_bounds = array<i64: 1, 32, 256>}]} {
    %c0 = arith.constant 0 : index
    %c0_0 = arith.constant 0 : index
    %c0_1 = arith.constant 0 : index
    %0 = vector.load %arg2[%c0, %c0_0, %c0_1] : memref<1x4x256xbf16, #tpu.memory_space<vmem>>, vector<1x4x256xbf16>
    %1 = vector.shape_cast %0 : vector<1x4x256xbf16> to vector<4x256xbf16>
    %c0_2 = arith.constant 0 : index
    %c0_3 = arith.constant 0 : index
    %c0_4 = arith.constant 0 : index
    %c0_5 = arith.constant 0 : index
    %2 = vector.load %arg3[%c0_2, %c0_3, %c0_4, %c0_5] : memref<1x1x4x32xbf16, #tpu.memory_space<vmem>>, vector<1x1x4x32xbf16>
    %3 = vector.shape_cast %2 : vector<1x1x4x32xbf16> to vector<4x32xbf16>
    %cst = arith.constant 0.000000e+00 : bf16
    %4 = vector.broadcast %cst : bf16 to vector<4x1xbf16>
    %5 = vector.extract_strided_slice %3 {offsets = [0, 0], sizes = [4, 16], strides = [1, 1]} : vector<4x32xbf16> to vector<4x16xbf16>
    %6 = vector.extract_strided_slice %3 {offsets = [0, 16], sizes = [4, 16], strides = [1, 1]} : vector<4x32xbf16> to vector<4x16xbf16>
    %7 = tpu.concatenate %4, %5, %1, %6, %4 in 1 : vector<4x1xbf16>, vector<4x16xbf16>, vector<4x256xbf16>, vector<4x16xbf16>, vector<4x1xbf16> -> vector<4x290xbf16>
    %8 = tpu.iota {dimensions = array<i32: 1>} : vector<1x256xi32>
    %c16_i32 = arith.constant 16 : i32
    %c0_i32 = arith.constant 0 : i32
    %9 = arith.cmpi eq, %c16_i32, %c0_i32 : i32
    %c1_i32 = arith.constant 1 : i32
    %10 = arith.select %9, %c1_i32, %c16_i32 : i32
    %11 = vector.broadcast %10 : i32 to vector<1x256xi32>
    %12 = arith.remsi %8, %11 : vector<1x256xi32>
    %c0_i32_6 = arith.constant 0 : i32
    %13 = vector.broadcast %c0_i32_6 : i32 to vector<1x256xi32>
    %14 = arith.cmpi ne, %12, %13 : vector<1x256xi32>
    %c0_i32_7 = arith.constant 0 : i32
    %15 = vector.broadcast %c0_i32_7 : i32 to vector<1x256xi32>
    %16 = arith.cmpi slt, %12, %15 : vector<1x256xi32>
    %c0_i32_8 = arith.constant 0 : i32
    %17 = arith.cmpi slt, %10, %c0_i32_8 : i32
    %18 = vector.broadcast %17 : i1 to vector<1x256xi1>
    %19 = vector.broadcast %18 : vector<1x256xi1> to vector<1x256xi1>
    %20 = arith.xori %16, %19 : vector<1x256xi1>
    %21 = arith.andi %20, %14 : vector<1x256xi1>
    %22 = vector.broadcast %10 : i32 to vector<1x256xi32>
    %23 = arith.addi %12, %22 : vector<1x256xi32>
    %24 = arith.select %21, %23, %12 : vector<1x256xi1>, vector<1x256xi32>
    %c0_i32_9 = arith.constant 0 : i32
    %25 = vector.broadcast %c0_i32_9 : i32 to vector<1x256xi32>
    %26 = arith.cmpi sgt, %24, %25 : vector<1x256xi32>
    %c15_i32 = arith.constant 15 : i32
    %27 = vector.broadcast %c15_i32 : i32 to vector<1x256xi32>
    %28 = arith.cmpi slt, %24, %27 : vector<1x256xi32>
    %29 = vector.extract_strided_slice %7 {offsets = [0, 0], sizes = [4, 256], strides = [1, 1]} : vector<4x290xbf16> to vector<4x256xbf16>
    %30 = vector.extract_strided_slice %7 {offsets = [0, 1], sizes = [4, 256], strides = [1, 1]} : vector<4x290xbf16> to vector<4x256xbf16>
    %31 = vector.extract_strided_slice %7 {offsets = [0, 2], sizes = [4, 256], strides = [1, 1]} : vector<4x290xbf16> to vector<4x256xbf16>
    %cst_10 = arith.constant 0.000000e+00 : bf16
    %32 = vector.broadcast %cst_10 : bf16 to vector<4x256xbf16>
    %33 = vector.shape_cast %26 : vector<1x256xi1> to vector<1x256xi1>
    %34 = vector.broadcast %33 : vector<1x256xi1> to vector<4x256xi1>
    %35 = arith.select %34, %29, %32 : vector<4x256xi1>, vector<4x256xbf16>
    %cst_11 = arith.constant 0.000000e+00 : bf16
    %36 = vector.broadcast %cst_11 : bf16 to vector<4x256xbf16>
    %37 = vector.shape_cast %28 : vector<1x256xi1> to vector<1x256xi1>
    %38 = vector.broadcast %37 : vector<1x256xi1> to vector<4x256xi1>
    %39 = arith.select %38, %31, %36 : vector<4x256xi1>, vector<4x256xbf16>
    %40 = vector.extract_strided_slice %7 {offsets = [0, 16], sizes = [4, 256], strides = [1, 1]} : vector<4x290xbf16> to vector<4x256xbf16>
    %41 = vector.extract_strided_slice %7 {offsets = [0, 17], sizes = [4, 256], strides = [1, 1]} : vector<4x290xbf16> to vector<4x256xbf16>
    %42 = vector.extract_strided_slice %7 {offsets = [0, 18], sizes = [4, 256], strides = [1, 1]} : vector<4x290xbf16> to vector<4x256xbf16>
    %cst_12 = arith.constant 0.000000e+00 : bf16
    %43 = vector.broadcast %cst_12 : bf16 to vector<4x256xbf16>
    %44 = vector.shape_cast %26 : vector<1x256xi1> to vector<1x256xi1>
    %45 = vector.broadcast %44 : vector<1x256xi1> to vector<4x256xi1>
    %46 = arith.select %45, %40, %43 : vector<4x256xi1>, vector<4x256xbf16>
    %cst_13 = arith.constant 0.000000e+00 : bf16
    %47 = vector.broadcast %cst_13 : bf16 to vector<4x256xbf16>
    %48 = vector.shape_cast %28 : vector<1x256xi1> to vector<1x256xi1>
    %49 = vector.broadcast %48 : vector<1x256xi1> to vector<4x256xi1>
    %50 = arith.select %49, %42, %47 : vector<4x256xi1>, vector<4x256xbf16>
    %51 = vector.extract_strided_slice %7 {offsets = [0, 32], sizes = [4, 256], strides = [1, 1]} : vector<4x290xbf16> to vector<4x256xbf16>
    %52 = vector.extract_strided_slice %7 {offsets = [0, 33], sizes = [4, 256], strides = [1, 1]} : vector<4x290xbf16> to vector<4x256xbf16>
    %53 = vector.extract_strided_slice %7 {offsets = [0, 34], sizes = [4, 256], strides = [1, 1]} : vector<4x290xbf16> to vector<4x256xbf16>
    %cst_14 = arith.constant 0.000000e+00 : bf16
    %54 = vector.broadcast %cst_14 : bf16 to vector<4x256xbf16>
    %55 = vector.shape_cast %26 : vector<1x256xi1> to vector<1x256xi1>
    %56 = vector.broadcast %55 : vector<1x256xi1> to vector<4x256xi1>
    %57 = arith.select %56, %51, %54 : vector<4x256xi1>, vector<4x256xbf16>
    %cst_15 = arith.constant 0.000000e+00 : bf16
    %58 = vector.broadcast %cst_15 : bf16 to vector<4x256xbf16>
    %59 = vector.shape_cast %28 : vector<1x256xi1> to vector<1x256xi1>
    %60 = vector.broadcast %59 : vector<1x256xi1> to vector<4x256xi1>
    %61 = arith.select %60, %53, %58 : vector<4x256xi1>, vector<4x256xbf16>
    %c0_16 = arith.constant 0 : index
    %c0_17 = arith.constant 0 : index
    %62 = vector.load %arg4[%c0_16, %c0_17] : memref<32x36xbf16, #tpu.memory_space<vmem>>, vector<32x36xbf16>
    %63 = tpu.concatenate %35, %30, %39, %46, %41, %50, %57, %52, %61 in 0 : vector<4x256xbf16>, vector<4x256xbf16>, vector<4x256xbf16>, vector<4x256xbf16>, vector<4x256xbf16>, vector<4x256xbf16>, vector<4x256xbf16>, vector<4x256xbf16>, vector<4x256xbf16> -> vector<36x256xbf16>
    %cst_18 = arith.constant dense<0.000000e+00> : vector<32x256xf32>
    %64 = tpu.matmul %62, %63, %cst_18 {dimension_numbers = #tpu.dot_dimension_numbers<[1], [0], [0], [1], [0, 0, 1, 1], [], []>} : vector<32x36xbf16>, vector<36x256xbf16>, vector<32x256xf32> -> vector<32x256xf32>
    %c0_19 = arith.constant 0 : index
    %c0_20 = arith.constant 0 : index
    %65 = vector.load %arg5[%c0_19, %c0_20] : memref<32x1xf32, #tpu.memory_space<vmem>>, vector<32x1xf32>
    %66 = vector.broadcast %65 : vector<32x1xf32> to vector<32x256xf32>
    %67 = arith.mulf %64, %66 : vector<32x256xf32>
    %c0_21 = arith.constant 0 : index
    %c0_22 = arith.constant 0 : index
    %68 = vector.load %arg6[%c0_21, %c0_22] : memref<32x1xf32, #tpu.memory_space<vmem>>, vector<32x1xf32>
    %69 = vector.broadcast %68 : vector<32x1xf32> to vector<32x256xf32>
    %70 = arith.addf %67, %69 : vector<32x256xf32>
    %cst_23 = arith.constant 0.000000e+00 : f32
    %71 = vector.broadcast %cst_23 : f32 to vector<32x256xf32>
    %72 = arith.maximumf %70, %71 : vector<32x256xf32>
    %73 = arith.truncf %72 : vector<32x256xf32> to vector<32x256xbf16>
    %c0_24 = arith.constant 0 : index
    %c0_25 = arith.constant 0 : index
    %c0_26 = arith.constant 0 : index
    %74 = vector.load %arg7[%c0_24, %c0_25, %c0_26] : memref<1x32x256xbf16, #tpu.memory_space<vmem>>, vector<1x32x256xbf16>
    %75 = vector.shape_cast %74 : vector<1x32x256xbf16> to vector<32x256xbf16>
    %76 = vector.shape_cast %73 : vector<32x256xbf16> to vector<1x32x256xbf16>
    tpu.vector_store %arg7[%c0_24, %c0_25, %c0_26], %76 {strides = array<i32>} : memref<1x32x256xbf16, #tpu.memory_space<vmem>>, vector<1x32x256xbf16>,
    return
  }
  func.func @transform_0(%arg0: i32, %arg1: i32) -> (i32, i32, i32) {
    %c0_i32 = arith.constant 0 : i32
    %c0_i32_0 = arith.constant 0 : i32
    return %arg0, %c0_i32, %arg1 : i32, i32, i32
  }
  func.func @transform_1(%arg0: i32, %arg1: i32) -> (i32, i32, i32, i32) {
    %c0_i32 = arith.constant 0 : i32
    %c0_i32_0 = arith.constant 0 : i32
    %c0_i32_1 = arith.constant 0 : i32
    return %arg0, %arg1, %c0_i32, %c0_i32_0 : i32, i32, i32, i32
  }
  func.func @transform_2(%arg0: i32, %arg1: i32) -> (i32, i32) {
    %c0_i32 = arith.constant 0 : i32
    %c0_i32_0 = arith.constant 0 : i32
    %c0_i32_1 = arith.constant 0 : i32
    return %c0_i32, %c0_i32_0 : i32, i32
  }
  func.func @transform_3(%arg0: i32, %arg1: i32) -> (i32, i32) {
    %c0_i32 = arith.constant 0 : i32
    %c0_i32_0 = arith.constant 0 : i32
    %c0_i32_1 = arith.constant 0 : i32
    return %c0_i32, %c0_i32_0 : i32, i32
  }
  func.func @transform_4(%arg0: i32, %arg1: i32) -> (i32, i32) {
    %c0_i32 = arith.constant 0 : i32
    %c0_i32_0 = arith.constant 0 : i32
    %c0_i32_1 = arith.constant 0 : i32
    return %c0_i32, %c0_i32_0 : i32, i32
  }
  func.func @transform_5(%arg0: i32, %arg1: i32) -> (i32, i32, i32) {
    %c0_i32 = arith.constant 0 : i32
    %c0_i32_0 = arith.constant 0 : i32
    return %arg0, %c0_i32, %arg1 : i32, i32, i32
  }
}

</mosaic_0001>

<llo_original>
// kernel: tile.0
$region0: #{tile.0}
  %s0 = inlined_call_operand.vmem [shape: f32[4,8], index: 0, kind: input, shape index: {}]
  %s1 = inlined_call_operand.vmem [shape: f32[32,1], index: 1, kind: output, shape index: {}]
  $region1: #{tile.0} parent=0
    #allocation0 [shape = 'u8[4096]{0}', space=vmem, size = 0x1000, scoped, tag = 'scoped mem for input reshape']
    %s3 = sshllo.u32 0, 4
    %v4 = vld [vmem:[%s0] sm:%s3]
    %5 = vst [vmem:[#allocation0] sm:%s3] %v4
    %v6 = vld [vmem:[#allocation0] sm:$0xf]
    %vm7 = vcmask 7168
    %8 = vst.msk [vmem:[%s1] ss:$8 sm:$0xf] %vm7, %v6
    %v9 = vld [vmem:[#allocation0] sm:$0xf]
    %10 = vrot.lane.b32.xlu0 %v9, 127
    %v11 = vpop.permute.xlu0 %10
    %vm12 = vcmask 7168
    %s13 = scalar_lea.vmem %s1, 1
    %14 = vst.msk [vmem:[%s13] ss:$8 sm:$0xf] %vm12, %v11
    %v15 = vld [vmem:[#allocation0] sm:$0xf]
    %16 = vrot.lane.b32.xlu0 %v15, 126
    %v17 = vpop.permute.xlu0 %16
    %vm18 = vcmask 7168
    %s19 = scalar_lea.vmem %s1, 2
    %20 = vst.msk [vmem:[%s19] ss:$8 sm:$0xf] %vm18, %v17
    %v21 = vld [vmem:[#allocation0] sm:$0xf]
    %22 = vrot.lane.b32.xlu0 %v21, 125
    %v23 = vpop.permute.xlu0 %22
    %vm24 = vcmask 7168
    %s25 = scalar_lea.vmem %s1, 3
    %26 = vst.msk [vmem:[%s25] ss:$8 sm:$0xf] %vm24, %v23
    %v27 = vld [vmem:[#allocation0] sm:$0xf]
    %28 = vrot.lane.b32.xlu0 %v27, 124
    %v29 = vpop.permute.xlu0 %28
    %vm30 = vcmask 7168
    %s31 = scalar_lea.vmem %s1, 4
    %32 = vst.msk [vmem:[%s31] ss:$8 sm:$0xf] %vm30, %v29
    %v33 = vld [vmem:[#allocation0] sm:$0xf]
    %34 = vrot.lane.b32.xlu0 %v33, 123
    %v35 = vpop.permute.xlu0 %34
    %vm36 = vcmask 7168
    %s37 = scalar_lea.vmem %s1, 5
    %38 = vst.msk [vmem:[%s37] ss:$8 sm:$0xf] %vm36, %v35
    %v39 = vld [vmem:[#allocation0] sm:$0xf]
    %40 = vrot.lane.b32.xlu0 %v39, 122
    %v41 = vpop.permute.xlu0 %40
    %vm42 = vcmask 7168
    %s43 = scalar_lea.vmem %s1, 6
    %44 = vst.msk [vmem:[%s43] ss:$8 sm:$0xf] %vm42, %v41
    %v45 = vld [vmem:[#allocation0] sm:$0xf]
    %46 = vrot.lane.b32.xlu0 %v45, 121
    %v47 = vpop.permute.xlu0 %46
    %vm48 = vcmask 7168
    %s49 = scalar_lea.vmem %s1, 7
    %50 = vst.msk [vmem:[%s49] ss:$8 sm:$0xf] %vm48, %v47

// kernel: tile.18
$region0: #{tile.18}
  #allocation0 [shape = 's32[1]{0}', space=sflag, size = 0x4, scoped, tag = 'scoped memory for tile.18']
  %s0 = inlined_call_operand.vmem [shape: f32[8], index: 0, kind: input, shape index: {}]
  %s1 = inlined_call_operand.vmem [shape: f32[4,8], index: 1, kind: output, shape index: {}]
  // Predicated region
  $region2: #{tile.18} parent=0 // pred_check
    _
  $region3: #{tile.18} parent=0 // pred_check_branch
    %3 = sbr.rel (0) target = $region5
  $region4: #{tile.18} parent=0 // pred_region
    _
  $region5: #{tile.18} parent=0 // pred_fallthru
    _
  %v4 = vld [vmem:[%s0] ss:$0 sm:$0xff]
  %5 = vst [vmem:[%s1] sm:$0xf] %v4

// kernel: up_conv_forward.1
$region0: #{up_conv_forward.1}
  #allocation0 [shape = 'u32[]', space=smem, size = 0x4, offset = 0x4, fixed_abs, tag = 'smem constant byte address 0x4 - core index']
  #allocation1 [shape = 'u32[144,128]{1,0:T(1,128)}', space=vmem, size = 0x12000, scoped, tag = 'internal scratch']
  %s0 = inlined_call_operand.vmem [shape: bf16[2,4,256], index: 0, kind: input, shape index: {}]
  %s1 = inlined_call_operand.vmem [shape: bf16[2,1,4,32], index: 1, kind: input, shape index: {}]
  %s2 = inlined_call_operand.vmem [shape: bf16[32,36], index: 2, kind: input, shape index: {}]
  %s3 = inlined_call_operand.vmem [shape: f32[32,1], index: 3, kind: input, shape index: {}]
  %s4 = inlined_call_operand.vmem [shape: f32[32,1], index: 4, kind: input, shape index: {}]
  %s5 = inlined_call_operand.vmem [shape: bf16[2,32,256], index: 5, kind: output, shape index: {}]
  %s6 = sld [smem:[#allocation0]]
  $region53: #{up_conv_forward.1} parent=0
    _
  %s8 = ssub.s32 1, %s6
  %s9 = scalar_select 0, %s8, %s6
  loop: start=0, step=1, limit=4
  $region2: #{up_conv_forward.1} parent=0 // loop_pre_header
    _
  $region3: #{up_conv_forward.1} parent=0 // loop_header
    %s11 = sphi 0, %s15
    %p12 = scmp.ge.s32.totalorder %s11, 4
    %s18 = sphi 0, %s30
    %s19 = sphi 0, %s26
    %s20 = sphi 0, %s18
    %s21 = sphi 0, %s19
    %s22 = sphi 0, %s20
    %s23 = sphi 0, %s21
    %s35 = sphi 0, %s37
    %s38 = sphi 0, %s35
    %s39 = sphi 0, %s38
    %s55 = sphi 0, %s39
    %s63 = sphi 0, %s65
    %s66 = sphi 0, %s63
    %s67 = sphi 0, %s66
    %s83 = sphi 0, %s67
    %s87 = sphi 0, %s87
    %s89 = sphi 0, %s87
    %s90 = sphi 0, %s89
    %s104 = sphi 0, %s90
    %s108 = sphi 0, %s108
    %s110 = sphi 0, %s108
    %s111 = sphi 0, %s110
    %s125 = sphi 0, %s111
    %s129 = sphi 0, %s129
    %s131 = sphi 0, %s129
    %s132 = sphi 0, %s131
    %s146 = sphi 0, %s132
    %s154 = sphi 0, %s156
    %s157 = sphi 0, %s154
    %s158 = sphi 0, %s157
    %s174 = sphi 0, %s158
  $region4: #{up_conv_forward.1} parent=0 // loop_header_branch
    %14 = sbr.rel (%p12) target = $region8
  $region5: #{up_conv_forward.1} parent=0 // loop_body
    %s16 = ssub.s32 %s11, 1
    %s17 = ssub.s32 %s11, 2
    %s24 = sadd.s32 1, %s19
    %p25 = scmp.ge.s32.totalorder %s24, 1
    %s26 = scalar_select %p25, 0, %s24
    %s27 = sadd.s32 1, %s18
    %s28 = scalar_select %p25, %s27, %s18
    %p29 = scmp.ge.s32.totalorder %s28, 2
    %s30 = scalar_select %p29, 0, %s28
    %s31 = ssub.s32 %s18, %s30
    %s32 = ssub.s32 %s19, %s26
    %s33 = sor.u32 %s31, %s32
    %p34 = scmp.eq.s32.totalorder %s33, 0
    %s36 = sadd.s32 %s35, 1
    %s37 = scalar_select %p34, %s35, %s36
    %p40 = pneg %p34
    %p41 = scmp.eq.s32.totalorder %s11, 1
    %p42 = por %p40, %p41
    %p43 = scmp.ne.s32.totalorder %s35, %s38
    %p44 = scmp.eq.s32.totalorder %s11, 0
    %p45 = por %p43, %p44
    %p46 = scmp.ne.s32.totalorder %s35, %s38
    %p47 = scmp.eq.s32.totalorder %s16, 1
    %p48 = por %p46, %p47
    %p49 = scmp.ne.s32.totalorder %s38, %s39
    %p50 = scmp.eq.s32.totalorder %s16, 0
    %p51 = por %p49, %p50
    %p52 = scmp.ne.s32.totalorder %s38, %s39
    %p53 = scmp.eq.s32.totalorder %s17, 1
    %p54 = por %p52, %p53
    %p56 = scmp.ne.s32.totalorder %s39, %s55
    %p57 = scmp.eq.s32.totalorder %s17, 0
    %p58 = por %p56, %p57
    %s59 = ssub.s32 %s18, %s30
    %s60 = ssub.s32 %s19, %s26
    %s61 = sor.u32 %s59, %s60
    %p62 = scmp.eq.s32.totalorder %s61, 0
    %s64 = sadd.s32 %s63, 1
    %s65 = scalar_select %p62, %s63, %s64
    %p68 = pneg %p62
    %p69 = scmp.eq.s32.totalorder %s11, 1
    %p70 = por %p68, %p69
    %p71 = scmp.ne.s32.totalorder %s63, %s66
    %p72 = scmp.eq.s32.totalorder %s11, 0
    %p73 = por %p71, %p72
    %p74 = scmp.ne.s32.totalorder %s63, %s66
    %p75 = scmp.eq.s32.totalorder %s16, 1
    %p76 = por %p74, %p75
    %p77 = scmp.ne.s32.totalorder %s66, %s67
    %p78 = scmp.eq.s32.totalorder %s16, 0
    %p79 = por %p77, %p78
    %p80 = scmp.ne.s32.totalorder %s66, %s67
    %p81 = scmp.eq.s32.totalorder %s17, 1
    %p82 = por %p80, %p81
    %p84 = scmp.ne.s32.totalorder %s67, %s83
    %p85 = scmp.eq.s32.totalorder %s17, 0
    %p86 = por %p84, %p85
    %s88 = sadd.s32 %s87, 1
    %p91 = scmp.eq.s32.totalorder %s11, 1
    %p92 = scmp.ne.s32.totalorder %s87, %s89
    %p93 = scmp.eq.s32.totalorder %s11, 0
    %p94 = por %p92, %p93
    %p95 = scmp.ne.s32.totalorder %s87, %s89
    %p96 = scmp.eq.s32.totalorder %s16, 1
    %p97 = por %p95, %p96
    %p98 = scmp.ne.s32.totalorder %s89, %s90
    %p99 = scmp.eq.s32.totalorder %s16, 0
    %p100 = por %p98, %p99
    %p101 = scmp.ne.s32.totalorder %s89, %s90
    %p102 = scmp.eq.s32.totalorder %s17, 1
    %p103 = por %p101, %p102
    %p105 = scmp.ne.s32.totalorder %s90, %s104
    %p106 = scmp.eq.s32.totalorder %s17, 0
    %p107 = por %p105, %p106
    %s109 = sadd.s32 %s108, 1
    %p112 = scmp.eq.s32.totalorder %s11, 1
    %p113 = scmp.ne.s32.totalorder %s108, %s110
    %p114 = scmp.eq.s32.totalorder %s11, 0
    %p115 = por %p113, %p114
    %p116 = scmp.ne.s32.totalorder %s108, %s110
    %p117 = scmp.eq.s32.totalorder %s16, 1
    %p118 = por %p116, %p117
    %p119 = scmp.ne.s32.totalorder %s110, %s111
    %p120 = scmp.eq.s32.totalorder %s16, 0
    %p121 = por %p119, %p120
    %p122 = scmp.ne.s32.totalorder %s110, %s111
    %p123 = scmp.eq.s32.totalorder %s17, 1
    %p124 = por %p122, %p123
    %p126 = scmp.ne.s32.totalorder %s111, %s125
    %p127 = scmp.eq.s32.totalorder %s17, 0
    %p128 = por %p126, %p127
    %s130 = sadd.s32 %s129, 1
    %p133 = scmp.eq.s32.totalorder %s11, 1
    %p134 = scmp.ne.s32.totalorder %s129, %s131
    %p135 = scmp.eq.s32.totalorder %s11, 0
    %p136 = por %p134, %p135
    %p137 = scmp.ne.s32.totalorder %s129, %s131
    %p138 = scmp.eq.s32.totalorder %s16, 1
    %p139 = por %p137, %p138
    %p140 = scmp.ne.s32.totalorder %s131, %s132
    %p141 = scmp.eq.s32.totalorder %s16, 0
    %p142 = por %p140, %p141
    %p143 = scmp.ne.s32.totalorder %s131, %s132
    %p144 = scmp.eq.s32.totalorder %s17, 1
    %p145 = por %p143, %p144
    %p147 = scmp.ne.s32.totalorder %s132, %s146
    %p148 = scmp.eq.s32.totalorder %s17, 0
    %p149 = por %p147, %p148
    %s150 = ssub.s32 %s18, %s30
    %s151 = ssub.s32 %s19, %s26
    %s152 = sor.u32 %s150, %s151
    %p153 = scmp.eq.s32.totalorder %s152, 0
    %s155 = sadd.s32 %s154, 1
    %s156 = scalar_select %p153, %s154, %s155
    %p159 = pneg %p153
    %p160 = scmp.eq.s32.totalorder %s11, 1
    %p161 = por %p159, %p160
    %p162 = scmp.ne.s32.totalorder %s154, %s157
    %p163 = scmp.eq.s32.totalorder %s11, 0
    %p164 = por %p162, %p163
    %p165 = scmp.ne.s32.totalorder %s154, %s157
    %p166 = scmp.eq.s32.totalorder %s16, 1
    %p167 = por %p165, %p166
    %p168 = scmp.ne.s32.totalorder %s157, %s158
    %p169 = scmp.eq.s32.totalorder %s16, 0
    %p170 = por %p168, %p169
    %p171 = scmp.ne.s32.totalorder %s157, %s158
    %p172 = scmp.eq.s32.totalorder %s17, 1
    %p173 = por %p171, %p172
    %p175 = scmp.ne.s32.totalorder %s158, %s174
    %p176 = scmp.eq.s32.totalorder %s17, 0
    %p177 = por %p175, %p176
    %p178 = scmp.le.s32.totalorder 1, %s11
    %p179 = scmp.lt.s32.totalorder %s11, 3
    %p180 = pnand %p178, %p179
    %p181 = pneg %p180
    // Predicated region
    $region9: #{up_conv_forward.1} parent=5 // pred_check
      _
    $region10: #{up_conv_forward.1} parent=5 // pred_check_branch
      %183 = sbr.rel (%p180) target = $region12
    $region11: #{up_conv_forward.1} parent=5 // pred_region
      %s184 = ssub.s32 %s11, 1
      // Predicated region
      $region13: #{up_conv_forward.1} parent=11 // pred_check
        %p185 = pneg %p100
      $region14: #{up_conv_forward.1} parent=11 // pred_check_branch
        %187 = sbr.rel (%p185) target = $region16
      $region15: #{up_conv_forward.1} parent=11 // pred_region
        _
      $region16: #{up_conv_forward.1} parent=11 // pred_fallthru
        _
      // Predicated region
      $region17: #{up_conv_forward.1} parent=11 // pred_check
        %p188 = pneg %p121
      $region18: #{up_conv_forward.1} parent=11 // pred_check_branch
        %190 = sbr.rel (%p188) target = $region20
      $region19: #{up_conv_forward.1} parent=11 // pred_region
        _
      $region20: #{up_conv_forward.1} parent=11 // pred_fallthru
        _
      // Predicated region
      $region21: #{up_conv_forward.1} parent=11 // pred_check
        %p191 = pneg %p142
      $region22: #{up_conv_forward.1} parent=11 // pred_check_branch
        %193 = sbr.rel (%p191) target = $region24
      $region23: #{up_conv_forward.1} parent=11 // pred_region
        _
      $region24: #{up_conv_forward.1} parent=11 // pred_fallthru
        _
    $region12: #{up_conv_forward.1} parent=5 // pred_fallthru
      _
    %p194 = scmp.lt.s32.totalorder %s11, 2
    // Predicated region
    $region25: #{up_conv_forward.1} parent=5 // pred_check
      %p195 = pneg %p194
    $region26: #{up_conv_forward.1} parent=5 // pred_check_branch
      %197 = sbr.rel (%p195) target = $region28
    $region27: #{up_conv_forward.1} parent=5 // pred_region
      // Predicated region
      $region29: #{up_conv_forward.1} parent=27 // pred_check
        %p198 = pneg %p45
      $region30: #{up_conv_forward.1} parent=27 // pred_check_branch
        %200 = sbr.rel (%p198) target = $region32
      $region31: #{up_conv_forward.1} parent=27 // pred_region
        %s201 = smul.u32 2, %s19
        %p202 = scmp.lt.s32.totalorder %s18, 1
        %s203 = scalar_select %p202, %s18, 1
        %p204 = scmp.lt.s32.totalorder %s201, 1
        %s205 = scalar_select %p204, %s201, 1
        %s206 = smul.addr %s203, 2
        %s207 = sadd.s32 %s205, %s206
        %s208 = smul.addr %s207, 2
        %s209 = scalar_lea.vmem %s0, %s208
        %s210 = smul.u32 2, %s19
      $region32: #{up_conv_forward.1} parent=27 // pred_fallthru
        _
      // Predicated region
      $region33: #{up_conv_forward.1} parent=27 // pred_check
        %p211 = pneg %p73
      $region34: #{up_conv_forward.1} parent=27 // pred_check_branch
        %213 = sbr.rel (%p211) target = $region36
      $region35: #{up_conv_forward.1} parent=27 // pred_region
        %p214 = scmp.lt.s32.totalorder %s18, 1
        %s215 = scalar_select %p214, %s18, 1
        %p216 = scmp.lt.s32.totalorder %s19, 0
        %s217 = scalar_select %p216, %s19, 0
        %s218 = sadd.s32 %s217, %s215
        %s219 = smul.addr %s218, 2
        %s220 = scalar_lea.vmem %s1, %s219
      $region36: #{up_conv_forward.1} parent=27 // pred_fallthru
        _
    $region28: #{up_conv_forward.1} parent=5 // pred_fallthru
      _
    %p221 = scmp.le.s32.totalorder 1, %s11
    %p222 = scmp.lt.s32.totalorder %s11, 3
    %p223 = pnand %p221, %p222
    %p224 = pneg %p223
    // Predicated region
    $region37: #{up_conv_forward.1} parent=5 // pred_check
      _
    $region38: #{up_conv_forward.1} parent=5 // pred_check_branch
      %226 = sbr.rel (%p223) target = $region40
    $region39: #{up_conv_forward.1} parent=5 // pred_region
      %s227 = ssub.s32 %s11, 1
      %s228 = smul.u32 2, %s21
      %p229 = scmp.lt.s32.totalorder %s20, 1
      %s230 = scalar_select %p229, %s20, 1
      %p231 = scmp.lt.s32.totalorder %s228, 1
      %s232 = scalar_select %p231, %s228, 1
      %s233 = smul.addr %s230, 2
      %s234 = sadd.s32 %s232, %s233
      %s235 = smul.addr %s234, 2
      %s236 = scalar_lea.vmem %s0, %s235
      %p237 = pneg %p51
      %p238 = pneg %p48
      %p239 = scmp.lt.s32.totalorder %s20, 1
      %s240 = scalar_select %p239, %s20, 1
      %p241 = scmp.lt.s32.totalorder %s21, 0
      %s242 = scalar_select %p241, %s21, 0
      %s243 = sadd.s32 %s242, %s240
      %s244 = smul.addr %s243, 2
      %s245 = scalar_lea.vmem %s1, %s244
      %p246 = pneg %p79
      %p247 = pneg %p76
      %p248 = pneg %p100
      %p249 = pneg %p97
      %p250 = pneg %p121
      %p251 = pneg %p118
      %p252 = pneg %p142
      %p253 = pneg %p139
      %p254 = pneg %p170
      %p255 = pneg %p167
      %s256 = smul.u32 2, %s21
      %p257 = scmp.lt.s32.totalorder %s20, 1
      %s258 = scalar_select %p257, %s20, 1
      %p259 = scmp.lt.s32.totalorder %s256, 1
      %s260 = scalar_select %p259, %s256, 1
      %s261 = smul.addr %s258, 8
      %s262 = sadd.s32 %s260, %s261
      %s263 = smul.addr %s262, 4
      %s264 = scalar_lea.vmem %s5, %s263
      %s265 = smul.u32 2, %s21
      %p266 = scmp.lt.s32.totalorder %s20, 1
      %s267 = scalar_select %p266, %s20, 1
      %p268 = scmp.lt.s32.totalorder %s265, 1
      %s269 = scalar_select %p268, %s265, 1
      %s270 = smul.addr %s267, 2
      %s271 = sadd.s32 %s269, %s270
      %s272 = smul.addr %s271, 2
      %s273 = scalar_lea.vmem %s0, %s272
      %s274 = smul.u32 2, %s21
      %p275 = scmp.lt.s32.totalorder %s20, 1
      %s276 = scalar_select %p275, %s20, 1
      %p277 = scmp.lt.s32.totalorder %s21, 0
      %s278 = scalar_select %p277, %s21, 0
      %s279 = sadd.s32 %s278, %s276
      %s280 = smul.addr %s279, 2
      %s281 = scalar_lea.vmem %s1, %s280
      %s282 = smul.u32 2, %s21
      %p283 = scmp.lt.s32.totalorder %s20, 1
      %s284 = scalar_select %p283, %s20, 1
      %p285 = scmp.lt.s32.totalorder %s282, 1
      %s286 = scalar_select %p285, %s282, 1
      %s287 = smul.addr %s284, 8
      %s288 = sadd.s32 %s286, %s287
      %s289 = smul.addr %s288, 4
      %s290 = scalar_lea.vmem %s5, %s289
      %s291 = smul.u32 2, %s21
      %v295 = vld [vmem:[%s273] sm:$0xf]
      %v296 = vld [vmem:[%s281] sm:$0x3]
      %v299 = vunpack.c.l.s4 1983009808
      %v300 = vunpack.c.0.s8 %v299
      %v301 = vlaneseq
      %v302 = vshrl.u32 %v301, 7
      %v303 = vsub.s32 %v300, %v302
      %v304 = vrot.slane %v296, %v303
      %305 = vrot.lane.b32.xlu0 %v304, 1
      %v306 = vpop.permute.xlu0 %305
      %v309 = vunpack.c.l.s4 1983009808
      %v310 = vunpack.c.0.s8 %v309
      %v311 = vlaneseq
      %v312 = vshrl.u32 %v311, 7
      %v313 = vsub.s32 %v310, %v312
      %v314 = vrot.slane %v295, %v313
      %v315 = vcombine.high %v314, %v314
      %316 = vrot.lane.b32.xlu0 %v314, 17
      %v317 = vpop.permute.xlu0 %316
      %318 = vrot.lane.b32.xlu0 %v315, 17
      %v319 = vpop.permute.xlu0 %318
      %vm320 = vcmask 138240
      %v321 = vsel %vm320, %v317, %v319
      %vm323 = vcmask 7168
      %v326 = vsel %vm323, 0, %v306
      %vm327 = vcmask 138240
      %v329 = vsel %vm327, %v326, %v317
      %v332 = vsel %vm327, %v319, %v306
      %vm333 = vcmask 269312
      %v334 = vsel %vm333, %v332, 0
      %v336 = vlaneseq
      %v337 = vand.u32 %v336, 127
      %v338 = vadd.s32 %v337, 128
      %vm339 = vcmp.lt.s32.totalorder %v337, 0
      %v340 = vsub.s32 0, %v337
      %v341 = vsel %vm339, %v340, %v337
      %v342 = vshrl.u32 %v341, 4
      %v343 = vand.u32 %v341, 15
      %v344 = vsub.s32 0, %v343
      %v345 = vsel %vm339, %v344, %v343
      %vm346 = vcmp.lt.s32.totalorder %v338, 0
      %v347 = vsub.s32 0, %v338
      %v348 = vsel %vm346, %v347, %v338
      %v349 = vshrl.u32 %v348, 4
      %v350 = vand.u32 %v348, 15
      %v351 = vsub.s32 0, %v350
      %v352 = vsel %vm346, %v351, %v350
      %vm353 = vcmp.ne.s32.totalorder %v345, 0
      %vm354 = vcmp.ne.s32.totalorder %v352, 0
      %vm355 = vcmp.lt.s32.totalorder %v345, 0
      %vm356 = vcmp.lt.s32.totalorder %v352, 0
      %vm357 = vmand %vm355, %vm353
      %vm358 = vmand %vm356, %vm354
      %v359 = vadd.s32 %v345, 16
      %v360 = vadd.s32 %v352, 16
      %v361 = vsel %vm357, %v359, %v345
      %v362 = vsel %vm358, %v360, %v352
      %vm363 = vcmp.gt.s32.totalorder %v361, 0
      %vm364 = vcmp.gt.s32.totalorder %v362, 0
      %vm365 = vcmp.lt.s32.totalorder %v361, 15
      %vm366 = vcmp.lt.s32.totalorder %v362, 15
      %v367 = vsel %vm363, 1, 0
      %v368 = vsel %vm364, 1, 0
      %vm369 = vcmp.eq.s32.totalorder %v367, 1
      %vm370 = vcmp.eq.s32.totalorder %v368, 1
      %vm371 = vmpackc.low %vm370, %vm369
      %v372 = vsel %vm371, 65537, 0
      %v373 = vlaneseq
      %v374 = vshrl.u32 %v373, 7
      %v375 = vsub.s32 0, %v374
      %v376 = vrot.slane %v372, %v375
      %v377 = vlaneseq
      %v378 = vshrl.u32 %v377, 7
      %v379 = vsub.s32 4, %v378
      %v380 = vrot.slane %v372, %v379
      %vm381 = vcmp.ne.s16.totalorder %v376, 0
      %vm382 = vcmp.ne.s16.totalorder %v380, 0
      %v383 = vsel %vm381, %v329, 0
      %v384 = vsel %vm382, %v321, 0
      %v385 = vsel %vm365, 1, 0
      %v386 = vsel %vm366, 1, 0
      %vm387 = vcmp.eq.s32.totalorder %v385, 1
      %vm388 = vcmp.eq.s32.totalorder %v386, 1
      %vm389 = vmpackc.low %vm388, %vm387
      %v390 = vsel %vm389, 65537, 0
      %v391 = vlaneseq
      %v392 = vshrl.u32 %v391, 7
      %v393 = vsub.s32 0, %v392
      %v394 = vrot.slane %v390, %v393
      %v395 = vlaneseq
      %v396 = vshrl.u32 %v395, 7
      %v397 = vsub.s32 4, %v396
      %v398 = vrot.slane %v390, %v397
      %399 = vrot.lane.b32.xlu0 %v394, 2
      %v400 = vpop.permute.xlu0 %399
      %401 = vrot.lane.b32.xlu0 %v398, 2
      %v402 = vpop.permute.xlu0 %401
      %vm403 = vcmask 15360
      %v404 = vsel %vm403, %v400, %v402
      %vm405 = vcmp.ne.s16.totalorder %v400, 0
      %vm406 = vcmp.ne.s16.totalorder %v404, 0
      %vm407 = vcmp.ne.s16.totalorder %v402, 0
      %v408 = vsel %vm405, %v329, 0
      %v409 = vsel %vm406, %v321, 0
      %v410 = vsel %vm407, %v334, 0
      %411 = vrot.lane.b32.xlu0 %v376, 16
      %v412 = vpop.permute.xlu0 %411
      %413 = vrot.lane.b32.xlu0 %v380, 16
      %v414 = vpop.permute.xlu0 %413
      %vm415 = vcmask 130048
      %v416 = vsel %vm415, %v412, %v414
      %vm417 = vcmp.ne.s16.totalorder %v412, 0
      %vm418 = vcmp.ne.s16.totalorder %v416, 0
      %vm419 = vcmp.ne.s16.totalorder %v414, 0
      %v420 = vsel %vm417, %v329, 0
      %v421 = vsel %vm418, %v321, 0
      %v422 = vsel %vm419, %v334, 0
      %423 = vrot.lane.b32.xlu0 %v394, 18
      %v424 = vpop.permute.xlu0 %423
      %425 = vrot.lane.b32.xlu0 %v398, 18
      %v426 = vpop.permute.xlu0 %425
      %vm427 = vcmask 146432
      %v428 = vsel %vm427, %v424, %v426
      %vm429 = vcmp.ne.s16.totalorder %v424, 0
      %vm430 = vcmp.ne.s16.totalorder %v428, 0
      %vm431 = vcmp.ne.s16.totalorder %v426, 0
      %v432 = vsel %vm429, %v329, 0
      %v433 = vsel %vm430, %v321, 0
      %v434 = vsel %vm431, %v334, 0
      %435 = vrot.lane.b32.xlu0 %v376, 32
      %v436 = vpop.permute.xlu0 %435
      %437 = vrot.lane.b32.xlu0 %v380, 32
      %v438 = vpop.permute.xlu0 %437
      %vm439 = vcmask 261120
      %v440 = vsel %vm439, %v436, %v438
      %vm441 = vcmp.ne.s16.totalorder %v436, 0
      %vm442 = vcmp.ne.s16.totalorder %v440, 0
      %vm443 = vcmp.ne.s16.totalorder %v438, 0
      %v444 = vsel %vm441, %v329, 0
      %v445 = vsel %vm442, %v321, 0
      %v446 = vsel %vm443, %v334, 0
      %447 = vrot.lane.b32.xlu0 %v394, 34
      %v448 = vpop.permute.xlu0 %447
      %449 = vrot.lane.b32.xlu0 %v398, 34
      %v450 = vpop.permute.xlu0 %449
      %vm451 = vcmask 277504
      %v452 = vsel %vm451, %v448, %v450
      %vm453 = vcmp.ne.s16.totalorder %v448, 0
      %vm454 = vcmp.ne.s16.totalorder %v452, 0
      %vm455 = vcmp.ne.s16.totalorder %v450, 0
      %v456 = vsel %vm453, %v329, 0
      %v457 = vsel %vm454, %v321, 0
      %v458 = vsel %vm455, %v334, 0
      %v459 = vld [vmem:[%s2] sm:$0xf]
      %v460 = vld [vmem:[%s2 + $0x4] sm:$0xf]
      %v461 = vld [vmem:[%s2 + $0x8] sm:$0xf]
      %v462 = vld [vmem:[%s2 + $0xc] sm:$0xf]
      %v465 = vrot.slane %v329, 6
      %v466 = vrot.slane %v321, 6
      %v467 = vrot.slane %v334, 6
      %468 = vrot.lane.b32.xlu0 %v465, 127
      %v469 = vpop.permute.xlu0 %468
      %470 = vrot.lane.b32.xlu0 %v466, 127
      %v471 = vpop.permute.xlu0 %470
      %472 = vrot.lane.b32.xlu0 %v467, 127
      %v473 = vpop.permute.xlu0 %472
      %vm474 = vcmask 1039360
      %v475 = vsel %vm474, %v469, %v471
      %v476 = vsel %vm474, %v471, %v473
      %v480 = vrot.slane %v408, 4
      %v481 = vrot.slane %v409, 4
      %v482 = vrot.slane %v410, 4
      %483 = vrot.lane.b32.xlu0 %v480, 126
      %v484 = vpop.permute.xlu0 %483
      %485 = vrot.lane.b32.xlu0 %v481, 126
      %v486 = vpop.permute.xlu0 %485
      %487 = vrot.lane.b32.xlu0 %v482, 126
      %v488 = vpop.permute.xlu0 %487
      %vm489 = vcmask 1031168
      %v490 = vsel %vm489, %v484, %v486
      %v491 = vsel %vm489, %v486, %v488
      %v495 = vrot.slane %v420, 2
      %v496 = vrot.slane %v421, 2
      %v497 = vrot.slane %v422, 2
      %498 = vrot.lane.b32.xlu0 %v495, 112
      %v499 = vpop.permute.xlu0 %498
      %500 = vrot.lane.b32.xlu0 %v496, 112
      %v501 = vpop.permute.xlu0 %500
      %502 = vrot.lane.b32.xlu0 %v497, 112
      %v503 = vpop.permute.xlu0 %502
      %vm504 = vcmask 916480
      %v505 = vsel %vm504, %v499, %v501
      %v506 = vsel %vm504, %v501, %v503
      %507 = vrot.lane.b32.xlu0 %v329, 111
      %v508 = vpop.permute.xlu0 %507
      %509 = vrot.lane.b32.xlu0 %v321, 111
      %v510 = vpop.permute.xlu0 %509
      %511 = vrot.lane.b32.xlu0 %v334, 111
      %v512 = vpop.permute.xlu0 %511
      %vm513 = vcmask 908288
      %v514 = vsel %vm513, %v508, %v510
      %v515 = vsel %vm513, %v510, %v512
      %v519 = vrot.slane %v432, 6
      %v520 = vrot.slane %v433, 6
      %v521 = vrot.slane %v434, 6
      %522 = vrot.lane.b32.xlu0 %v519, 110
      %v523 = vpop.permute.xlu0 %522
      %524 = vrot.lane.b32.xlu0 %v520, 110
      %v525 = vpop.permute.xlu0 %524
      %526 = vrot.lane.b32.xlu0 %v521, 110
      %v527 = vpop.permute.xlu0 %526
      %vm528 = vcmask 900096
      %v529 = vsel %vm528, %v523, %v525
      %v530 = vsel %vm528, %v525, %v527
      %v534 = vrot.slane %v444, 4
      %v535 = vrot.slane %v445, 4
      %v536 = vrot.slane %v446, 4
      %537 = vrot.lane.b32.xlu0 %v534, 96
      %v538 = vpop.permute.xlu0 %537
      %539 = vrot.lane.b32.xlu0 %v535, 96
      %v540 = vpop.permute.xlu0 %539
      %541 = vrot.lane.b32.xlu0 %v536, 96
      %v542 = vpop.permute.xlu0 %541
      %vm543 = vcmask 785408
      %v544 = vsel %vm543, %v538, %v540
      %v545 = vsel %vm543, %v540, %v542
      %v546 = vrot.slane %v329, 2
      %v547 = vrot.slane %v321, 2
      %v548 = vrot.slane %v334, 2
      %549 = vrot.lane.b32.xlu0 %v546, 95
      %v550 = vpop.permute.xlu0 %549
      %551 = vrot.lane.b32.xlu0 %v547, 95
      %v552 = vpop.permute.xlu0 %551
      %553 = vrot.lane.b32.xlu0 %v548, 95
      %v554 = vpop.permute.xlu0 %553
      %vm555 = vcmask 777216
      %v556 = vsel %vm555, %v550, %v552
      %v557 = vsel %vm555, %v552, %v554
      %561 = vrot.lane.b32.xlu0 %v456, 94
      %v562 = vpop.permute.xlu0 %561
      %563 = vrot.lane.b32.xlu0 %v457, 94
      %v564 = vpop.permute.xlu0 %563
      %565 = vrot.lane.b32.xlu0 %v458, 94
      %v566 = vpop.permute.xlu0 %565
      %vm567 = vcmask 769024
      %v568 = vsel %vm567, %v562, %v564
      %v569 = vsel %vm567, %v564, %v566
      %vm570 = vcmask 1041408
      %v573 = vsel %vm570, %v383, %v475
      %v576 = vsel %vm570, %v384, %v476
      %vm577 = vcmask 1043456
      %v579 = vsel %vm577, %v573, %v490
      %v581 = vsel %vm577, %v576, %v491
      %vm582 = vcmask 1045504
      %v584 = vsel %vm582, %v579, %v505
      %v587 = vsel %vm582, %v581, %v506
      %v591 = vsel %vm570, %v514, %v529
      %v594 = vsel %vm570, %v515, %v530
      %v596 = vsel %vm577, %v591, %v544
      %v598 = vsel %vm577, %v594, %v545
      %v600 = vsel %vm582, %v596, %v556
      %v603 = vsel %vm582, %v598, %v557
      %v609 = vunpack.c.l.b16 %v459
      %v610 = vunpack.c.l.b16 %v460
      %v611 = vunpack.c.l.b16 %v461
      %v612 = vunpack.c.l.b16 %v462
      %v613 = vpack.c.b16 %v610, %v609
      %v614 = vpack.c.b16 %v612, %v611
      %vm615 = vcmask 293888
      %v617 = vsel %vm615, %v613, 0
      %v620 = vsel %vm615, %v614, 0
      %v623 = vsel %vm570, %v568, 0
      %v626 = vsel %vm570, %v569, 0
      %628 = vmatprep.subr.bf16.mxu0 %v587
      %629 = vmatpush1.bf16.msra.mxu0 %v584
      %630 = vmatprep.subr.bf16.mxu0 %v603
      %631 = vmatpush1.bf16.msra.mxu0 %v600
      %632 = vmatprep.subr.bf16.mxu0 %v626
      %633 = vmatpush1.bf16.msra.mxu0 %v623
      %634 = vmatprep.subr.bf16.mxu0 0
      %635 = vmatpush1.bf16.msra.mxu0 0
      %636 = vmatprep.subr.bf16.mxu0 0
      %637 = vmatpush1.bf16.msra.mxu0 0
      %638 = vmatprep.subr.bf16.mxu0 0
      %639 = vmatpush1.bf16.msra.mxu0 0
      %640 = vmatprep.subr.bf16.mxu0 0
      %641 = vmatpush1.bf16.msra.mxu0 0
      %642 = vmatprep.subr.bf16.mxu0 0
      %643 = vmatpush1.bf16.msra.mxu0 0
      %644 = vmatprep.subr.bf16.mxu0 0
      %645 = vmatpush1.bf16.msra.mxu0 0
      %646 = vmatprep.subr.bf16.mxu0 0
      %647 = vmatpush1.bf16.msra.mxu0 0
      %648 = vmatprep.subr.bf16.mxu0 0
      %649 = vmatpush1.bf16.msra.mxu0 0
      %650 = vmatprep.subr.bf16.mxu0 0
      %651 = vmatpush1.bf16.msra.mxu0 0
      %652 = vmatprep.subr.bf16.mxu0 0
      %653 = vmatpush1.bf16.msra.mxu0 0
      %654 = vmatprep.subr.bf16.mxu0 0
      %655 = vmatpush1.bf16.msra.mxu0 0
      %656 = vmatprep.subr.bf16.mxu0 0
      %657 = vmatpush1.bf16.msra.mxu0 0
      %658 = vmatprep.subr.bf16.mxu0 0
      %659 = vmatpush1.bf16.msra.mxu0 0
      %660 = vmatprep.mubr.bf16.mxu0 0
      %661 = vmatmul.mubr.bf16.gmra.mrb[0].mxu0 %v617
      %v662 = vpop.f32.mrb[0].mxu0
      %v663 = vadd.f32 0.0, %v662
      %v664 = vpop.f32.mrb[0].mxu0
      %v665 = vadd.f32 0.0, %v664
      %v666 = vpop.f32.mrb[0].mxu0
      %v667 = vadd.f32 0.0, %v666
      %v668 = vpop.f32.mrb[0].mxu0
      %v669 = vadd.f32 0.0, %v668
      %670 = vmatprep.mubr.bf16.mxu0 0
      %671 = vmatmul.mubr.bf16.gmra.mrb[0].mxu0 %v620
      %v672 = vpop.f32.mrb[0].mxu0
      %v673 = vadd.f32 0.0, %v672
      %v674 = vpop.f32.mrb[0].mxu0
      %v675 = vadd.f32 0.0, %v674
      %v676 = vpop.f32.mrb[0].mxu0
      %v677 = vadd.f32 0.0, %v676
      %v678 = vpop.f32.mrb[0].mxu0
      %v679 = vadd.f32 0.0, %v678
      %680 = vdwg.mxu0
      %v681 = vld [vmem:[%s3] sm:$0xff]
      %v682 = vld [vmem:[%s3 + $0x8] sm:$0xff]
      %v683 = vld [vmem:[%s3 + $0x10] sm:$0xff]
      %v684 = vld [vmem:[%s3 + $0x18] sm:$0xff]
      %686 = vset.pattern.permute.xlu0 0
      %687 = vperm.xlu0 %686, %v681
      %v688 = vpop.permute.xlu0 %687
      %691 = vset.pattern.permute.xlu0 0
      %692 = vperm.xlu0 %691, %v682
      %v693 = vpop.permute.xlu0 %692
      %696 = vset.pattern.permute.xlu0 0
      %697 = vperm.xlu0 %696, %v683
      %v698 = vpop.permute.xlu0 %697
      %701 = vset.pattern.permute.xlu0 0
      %702 = vperm.xlu0 %701, %v684
      %v703 = vpop.permute.xlu0 %702
      %v705 = vmul.f32 %v663, %v688
      %v706 = vmul.f32 %v665, %v688
      %v707 = vmul.f32 %v667, %v693
      %v708 = vmul.f32 %v669, %v693
      %v709 = vmul.f32 %v673, %v698
      %v710 = vmul.f32 %v675, %v698
      %v711 = vmul.f32 %v677, %v703
      %v712 = vmul.f32 %v679, %v703
      %v713 = vld [vmem:[%s4] sm:$0xff]
      %v714 = vld [vmem:[%s4 + $0x8] sm:$0xff]
      %v715 = vld [vmem:[%s4 + $0x10] sm:$0xff]
      %v716 = vld [vmem:[%s4 + $0x18] sm:$0xff]
      %718 = vset.pattern.permute.xlu0 0
      %719 = vperm.xlu0 %718, %v713
      %v720 = vpop.permute.xlu0 %719
      %723 = vset.pattern.permute.xlu0 0
      %724 = vperm.xlu0 %723, %v714
      %v725 = vpop.permute.xlu0 %724
      %728 = vset.pattern.permute.xlu0 0
      %729 = vperm.xlu0 %728, %v715
      %v730 = vpop.permute.xlu0 %729
      %733 = vset.pattern.permute.xlu0 0
      %734 = vperm.xlu0 %733, %v716
      %v735 = vpop.permute.xlu0 %734
      %v737 = vadd.f32 %v705, %v720
      %v738 = vadd.f32 %v706, %v720
      %v739 = vadd.f32 %v707, %v725
      %v740 = vadd.f32 %v708, %v725
      %v741 = vadd.f32 %v709, %v730
      %v742 = vadd.f32 %v710, %v730
      %v743 = vadd.f32 %v711, %v735
      %v744 = vadd.f32 %v712, %v735
      %v745 = vmax.f32 %v737, 0.0
      %v746 = vmax.f32 %v738, 0.0
      %v747 = vmax.f32 %v739, 0.0
      %v748 = vmax.f32 %v740, 0.0
      %v749 = vmax.f32 %v741, 0.0
      %v750 = vmax.f32 %v742, 0.0
      %v751 = vmax.f32 %v743, 0.0
      %v752 = vmax.f32 %v744, 0.0
      %v753 = vpack.c.bf16 %v747, %v745
      %v754 = vpack.c.bf16 %v748, %v746
      %v755 = vpack.c.bf16 %v751, %v749
      %v756 = vpack.c.bf16 %v752, %v750
      %v761 = vunpack.c.l.b16 %v753
      %v762 = vunpack.c.l.b16 %v754
      %v763 = vunpack.c.h.b16 %v753
      %v764 = vunpack.c.h.b16 %v754
      %v765 = vunpack.c.l.b16 %v755
      %v766 = vunpack.c.l.b16 %v756
      %v767 = vunpack.c.h.b16 %v755
      %v768 = vunpack.c.h.b16 %v756
      %v769 = vpack.c.b16 %v762, %v761
      %v770 = vpack.c.b16 %v764, %v763
      %v771 = vpack.c.b16 %v766, %v765
      %v772 = vpack.c.b16 %v768, %v767
      %777 = vst [vmem:[%s290] sm:$0xff] %v769
      %778 = vst [vmem:[%s290 + $0x8] sm:$0xff] %v770
      %779 = vst [vmem:[%s290 + $0x10] sm:$0xff] %v771
      %780 = vst [vmem:[%s290 + $0x18] sm:$0xff] %v772
      %s781 = smul.u32 2, %s21
      %p782 = scmp.lt.s32.totalorder %s20, 1
      %s783 = scalar_select %p782, %s20, 1
      %p784 = scmp.lt.s32.totalorder %s781, 1
      %s785 = scalar_select %p784, %s781, 1
      %s786 = smul.addr %s783, 8
      %s787 = sadd.s32 %s785, %s786
      %s788 = smul.addr %s787, 4
      %s789 = scalar_lea.vmem %s5, %s788
      // Predicated region
      $region41: #{up_conv_forward.1} parent=39 // pred_check
        %p790 = pneg %p167
      $region42: #{up_conv_forward.1} parent=39 // pred_check_branch
        %792 = sbr.rel (%p790) target = $region44
      $region43: #{up_conv_forward.1} parent=39 // pred_region
        %s793 = smul.u32 2, %s21
      $region44: #{up_conv_forward.1} parent=39 // pred_fallthru
        _
    $region40: #{up_conv_forward.1} parent=5 // pred_fallthru
      _
    %p794 = scmp.le.s32.totalorder 2, %s11
    // Predicated region
    $region45: #{up_conv_forward.1} parent=5 // pred_check
      %p795 = pneg %p794
    $region46: #{up_conv_forward.1} parent=5 // pred_check_branch
      %797 = sbr.rel (%p795) target = $region48
    $region47: #{up_conv_forward.1} parent=5 // pred_region
      %s798 = ssub.s32 %s11, 2
      // Predicated region
      $region49: #{up_conv_forward.1} parent=47 // pred_check
        %p799 = pneg %p173
      $region50: #{up_conv_forward.1} parent=47 // pred_check_branch
        %801 = sbr.rel (%p799) target = $region52
      $region51: #{up_conv_forward.1} parent=47 // pred_region
        %s802 = smul.u32 2, %s23
        %p803 = scmp.lt.s32.totalorder %s22, 1
        %s804 = scalar_select %p803, %s22, 1
        %p805 = scmp.lt.s32.totalorder %s802, 1
        %s806 = scalar_select %p805, %s802, 1
        %s807 = smul.addr %s804, 8
        %s808 = sadd.s32 %s806, %s807
        %s809 = smul.addr %s808, 4
        %s810 = scalar_lea.vmem %s5, %s809
      $region52: #{up_conv_forward.1} parent=47 // pred_fallthru
        _
    $region48: #{up_conv_forward.1} parent=5 // pred_fallthru
      _
  $region6: #{up_conv_forward.1} parent=0 // loop_footer
    %s15 = sadd.s32 1, %s11
  $region7: #{up_conv_forward.1} parent=0 // loop_footer_branch
    %10 = sbr.rel target = $region3
  $region8: #{up_conv_forward.1} parent=0 // loop_exit
    _

</llo_original>
